<compile_context>
chip_gen: v7x
topology: tpu7x:2x2x1
jax: 0.10.0
libtpu: 0.0.40
codegen_flags: <defaults>
</compile_context>

<pallas_src>
import functools
import math

import jax
import jax.numpy as jnp
from jax.experimental import pallas as pl
from jax.experimental.pallas import tpu as pltpu


def _se_kernel(x_ref, w1_ref, b1_ref, w2_ref, b2_ref, o_ref, *, inv_hw,
               f32_multiply):
    # x_ref block: (TBs, g*C, HW), native dtype, sublane-dense.
    x = x_ref[...]

    # Squeeze: AdaptiveAvgPool2d(1) == mean over the spatial (lane) axis.
    # Accumulate in f32 inside the reduce (no full-slab f32 materialization).
    pooled = jnp.sum(x, axis=-1, dtype=jnp.float32) * inv_hw       # (TBs, g*C)

    # Excitation MLP (tiny, f32).  Weights are block-diagonal (kron(I_g, W))
    # so each of the g samples folded into the channel axis gets its own 1x1
    # convs.  jnp.dot is kept even for tiny dims; it overlaps with the DMA.
    h = jnp.dot(pooled, w1_ref[...],
                preferred_element_type=jnp.float32) + b1_ref[...]  # (TBs, g*R)
    h = h * jax.nn.sigmoid(h)                                      # SiLU
    s = jnp.dot(h, w2_ref[...],
                preferred_element_type=jnp.float32) + b2_ref[...]  # (TBs, g*C)
    gate = jax.nn.sigmoid(s)                                       # f32

    # Scale: broadcast the per-(sample, channel) gate over the spatial lanes.
    if f32_multiply:
        # v5e: no native bf16 VALU -> multiply in f32, cast only the result.
        o_ref[...] = (x.astype(jnp.float32) * gate[:, :, None]).astype(o_ref.dtype)
    else:
        o_ref[...] = x * gate[:, :, None].astype(x.dtype)


def _generation_hints():
    """Slab target, TensorCore count and multiply-dtype policy per TPU gen."""
    kind = ""
    try:
        kind = jax.devices()[0].device_kind.lower()
    except Exception:
        pass
    target_bytes = 6 << 20
    num_cores = 1
    f32_multiply = False
    if "v5" in kind:
        target_bytes = 6 << 20
        f32_multiply = True          # v5e VPU has no native bf16 ALUs
    elif "v6" in kind:
        target_bytes = 8 << 20
    elif "v7" in kind:
        target_bytes = 8 << 20
        num_cores = 2                # two TensorCores share the grid axis
    return target_bytes, num_cores, f32_multiply


def _pick_super_tile(n_super, bytes_per_super, target_bytes, num_cores):
    """Pick (supersamples per block, grid steps) minimizing modeled wall time.

    Models per-step fixed overhead (~0.35 us of HBM time) and the split of the
    sequential grid across `num_cores` TensorCores; allows padding n_super up
    to grid*tb (zero-padded samples are sliced off by the wrapper).
    """
    overhead_bytes = max(1, target_bytes // 16)
    best = None
    for tb in range(1, n_super + 1):
        if tb > 1 and tb * bytes_per_super > target_bytes:
            break                                   # keep slabs within target
        grid = pl.cdiv(n_super, tb)
        wall = pl.cdiv(grid, num_cores) * (tb * bytes_per_super + overhead_bytes)
        key = (wall, -tb)                           # min wall, then big slabs
        if best is None or key < best[0]:
            best = (key, tb, grid)
    return best[1], best[2]


def squeeze_excitation(x_nchw, w1, b1, w2, b2):
    """x_nchw: (N, C, H, W); w1: (R, C); b1: (R,); w2: (C, R); b2: (C,).
    w1/w2 are the 1x1 Conv2d weights with the trailing 1x1 dims squeezed."""
    N, C, H, W = x_nchw.shape
    R = w1.shape[0]
    HW = H * W
    itemsize = jnp.dtype(x_nchw.dtype).itemsize

    target_bytes, num_cores, f32_multiply = _generation_hints()

    # Fold g consecutive samples into one "super-sample" so the sublane dim of
    # the block (g*C) is a multiple of the native sublane tile -> dense vregs,
    # unmasked loads/stores.  For typical EfficientNet C (>= 16, mult. of 8/16)
    # g == 1 and nothing changes.
    sublane = {4: 8, 2: 16, 1: 32}.get(itemsize, 8)
    g = sublane // math.gcd(C, sublane)
    GC, GR = g * C, g * R

    bytes_per_super = GC * HW * itemsize
    n_super = pl.cdiv(N, g)
    tbs, grid = _pick_super_tile(n_super, bytes_per_super, target_bytes, num_cores)
    n_super_pad = tbs * grid
    n_pad = n_super_pad * g

    x_flat = x_nchw.reshape(N, C, HW)
    if n_pad != N:
        # Zero-pad the batch; padded samples produce zero rows that are sliced
        # off below (their gate value is irrelevant since x is zero there).
        x_flat = jnp.pad(x_flat, ((0, n_pad - N), (0, 0), (0, 0)))
    x_super = x_flat.reshape(n_super_pad, GC, HW)

    # Block-diagonal excitation weights: kron(I_g, W^T) applies the per-sample
    # 1x1 convs independently to each sample folded into the channel axis.
    f32 = jnp.float32
    eye_g = jnp.eye(g, dtype=f32)
    w1_super = jnp.kron(eye_g, w1.T.astype(f32))            # (GC, GR)
    w2_super = jnp.kron(eye_g, w2.T.astype(f32))            # (GR, GC)
    b1_super = jnp.tile(b1.astype(f32), g).reshape(1, GR)   # (1, GR)
    b2_super = jnp.tile(b2.astype(f32), g).reshape(1, GC)   # (1, GC)

    block_bytes = tbs * bytes_per_super
    weight_bytes = (2 * GC * GR + GC + GR) * 4
    # Double-buffered in + out slabs + weights + slack; >= previous 32 MiB.
    vmem_limit = int(min(128 << 20,
                         max(32 << 20, 4 * block_bytes + weight_bytes + (8 << 20))))

    kernel = functools.partial(_se_kernel, inv_hw=1.0 / HW,
                               f32_multiply=f32_multiply)

    cost = pl.CostEstimate(
        flops=int(2 * n_pad * C * HW + 4 * n_pad * C * R),
        transcendentals=int(n_pad * (2 * R + C)),
        bytes_accessed=int(2 * n_pad * C * HW * itemsize + weight_bytes),
    )

    out_super = pl.pallas_call(
        kernel,
        out_shape=jax.ShapeDtypeStruct((n_super_pad, GC, HW), x_nchw.dtype),
        grid_spec=pltpu.PrefetchScalarGridSpec(
            num_scalar_prefetch=0,
            grid=(grid,),
            in_specs=[
                pl.BlockSpec((tbs, GC, HW), lambda i: (i, 0, 0)),  # x slab
                pl.BlockSpec((GC, GR), lambda i: (0, 0)),          # W1 (blockdiag)
                pl.BlockSpec((1, GR), lambda i: (0, 0)),           # b1
                pl.BlockSpec((GR, GC), lambda i: (0, 0)),          # W2 (blockdiag)
                pl.BlockSpec((1, GC), lambda i: (0, 0)),           # b2
            ],
            out_specs=pl.BlockSpec((tbs, GC, HW), lambda i: (i, 0, 0)),
        ),
        compiler_params=pltpu.CompilerParams(
            dimension_semantics=("parallel",),
            vmem_limit_bytes=vmem_limit,
        ),
        cost_estimate=cost,
    )(x_super, w1_super, b1_super, w2_super, b2_super)

    out = out_super.reshape(n_pad, C, HW)[:N]
    return out.reshape(N, C, H, W)


def squeeze_excitation_ref(x, w1, b1, w2, b2):
    # Pure-JAX reference (NCHW), mirrors the PyTorch module exactly.
    pooled = jnp.mean(x, axis=(2, 3))                      # (N, C)
    h = pooled @ w1.T + b1                                 # (N, R)
    h = h * jax.nn.sigmoid(h)                              # SiLU
    s = h @ w2.T + b2                                      # (N, C)
    s = jax.nn.sigmoid(s)
    return x * s[:, :, None, None]


if __name__ == "__main__":
    key = jax.random.PRNGKey(0)
    k_x, k_w1, k_b1, k_w2, k_b2 = jax.random.split(key, 5)

    # Small shapes consistent with the module: batch=2, channels=4, spatial=16,
    # reduce_dim=2 (e.g. in_channels // reduction).
    N, C, H, W = 2, 4, 16, 16
    R = 2

    x = jax.random.normal(k_x, (N, C, H, W), dtype=jnp.float32)
    # Deterministic synthetic params (Conv2d 1x1 weights flattened to 2D).
    w1 = jax.random.normal(k_w1, (R, C), dtype=jnp.float32) * 0.1
    b1 = jax.random.normal(k_b1, (R,), dtype=jnp.float32) * 0.1
    w2 = jax.random.normal(k_w2, (C, R), dtype=jnp.float32) * 0.1
    b2 = jax.random.normal(k_b2, (C,), dtype=jnp.float32) * 0.1

    # f32 path: must match the reference tightly.
    out = jax.block_until_ready(squeeze_excitation(x, w1, b1, w2, b2))
    ref = squeeze_excitation_ref(x, w1, b1, w2, b2)
    assert out.shape == (N, C, H, W)
    assert jnp.allclose(out, ref, atol=1e-5, rtol=1e-5), "f32 mismatch vs reference"

    # bf16 path: pooling/MLP accumulate in f32; the gate multiply happens in
    # bf16 (v6e/v7x) or f32 (v5e), so compare at bf16-level tolerance.
    xb = x.astype(jnp.bfloat16)
    outb = jax.block_until_ready(squeeze_excitation(xb, w1, b1, w2, b2))
    refb = squeeze_excitation_ref(xb.astype(jnp.float32), w1, b1, w2, b2)
    assert outb.shape == (N, C, H, W)
    assert jnp.allclose(outb.astype(jnp.float32), refb, atol=5e-2, rtol=5e-2), \
        "bf16 mismatch vs reference"

    print("KERNEL_OK")
</pallas_src>

<mosaic_0001>
module attributes {stable_mosaic.version = 11 : i64} {
  func.func @_se_kernel(%arg0: i32, %arg1: memref<1x8x256xf32, #tpu.memory_space<vmem>>, %arg2: memref<8x4xf32, #tpu.memory_space<vmem>>, %arg3: memref<1x4xf32, #tpu.memory_space<vmem>>, %arg4: memref<4x8xf32, #tpu.memory_space<vmem>>, %arg5: memref<1x8xf32, #tpu.memory_space<vmem>>, %arg6: memref<1x8x256xf32, #tpu.memory_space<vmem>>) attributes {dimension_semantics = [#tpu.dimension_semantics<parallel>], iteration_bounds = array<i64: 1>, scalar_prefetch = 0 : i64, scratch_operands = 0 : i64, tpu.core_type = #tpu.core_type<tc>, window_params = [{transform_indices = @transform_0, window_bounds = array<i64: 1, 8, 256>}, {pipeline_mode = #tpu.pipeline_mode<synchronous>, transform_indices = @transform_1, window_bounds = array<i64: 8, 4>}, {pipeline_mode = #tpu.pipeline_mode<synchronous>, transform_indices = @transform_2, window_bounds = array<i64: 1, 4>}, {pipeline_mode = #tpu.pipeline_mode<synchronous>, transform_indices = @transform_3, window_bounds = array<i64: 4, 8>}, {pipeline_mode = #tpu.pipeline_mode<synchronous>, transform_indices = @transform_4, window_bounds = array<i64: 1, 8>}, {transform_indices = @transform_5, window_bounds = array<i64: 1, 8, 256>}]} {
    %c0 = arith.constant 0 : index
    %c0_0 = arith.constant 0 : index
    %c0_1 = arith.constant 0 : index
    %0 = vector.load %arg1[%c0, %c0_0, %c0_1] : memref<1x8x256xf32, #tpu.memory_space<vmem>>, vector<1x8x256xf32>
    %cst = arith.constant dense<0.000000e+00> : vector<1x8xf32>
    %1 = vector.multi_reduction <add>, %0, %cst [2] : vector<1x8x256xf32> to vector<1x8xf32>
    %cst_2 = arith.constant 3.906250e-03 : f32
    %2 = vector.broadcast %cst_2 : f32 to vector<1x8xf32>
    %3 = arith.mulf %1, %2 : vector<1x8xf32>
    %c0_3 = arith.constant 0 : index
    %c0_4 = arith.constant 0 : index
    %4 = vector.load %arg2[%c0_3, %c0_4] : memref<8x4xf32, #tpu.memory_space<vmem>>, vector<8x4xf32>
    %cst_5 = arith.constant dense<0.000000e+00> : vector<1x4xf32>
    %5 = tpu.matmul %3, %4, %cst_5 {dimension_numbers = #tpu.dot_dimension_numbers<[1], [0], [0], [1], [0, 0, 1, 1], [], []>} : vector<1x8xf32>, vector<8x4xf32>, vector<1x4xf32> -> vector<1x4xf32>
    %c0_6 = arith.constant 0 : index
    %c0_7 = arith.constant 0 : index
    %6 = vector.load %arg3[%c0_6, %c0_7] : memref<1x4xf32, #tpu.memory_space<vmem>>, vector<1x4xf32>
    %7 = arith.addf %5, %6 : vector<1x4xf32>
    %8 = arith.negf %7 : vector<1x4xf32>
    %9 = math.exp %8 : vector<1x4xf32>
    %cst_8 = arith.constant 1.000000e+00 : f32
    %10 = vector.broadcast %cst_8 : f32 to vector<1x4xf32>
    %11 = arith.addf %10, %9 : vector<1x4xf32>
    %12 = arith.divf %10, %11 : vector<1x4xf32>
    %13 = arith.mulf %7, %12 : vector<1x4xf32>
    %c0_9 = arith.constant 0 : index
    %c0_10 = arith.constant 0 : index
    %14 = vector.load %arg4[%c0_9, %c0_10] : memref<4x8xf32, #tpu.memory_space<vmem>>, vector<4x8xf32>
    %cst_11 = arith.constant dense<0.000000e+00> : vector<1x8xf32>
    %15 = tpu.matmul %13, %14, %cst_11 {dimension_numbers = #tpu.dot_dimension_numbers<[1], [0], [0], [1], [0, 0, 1, 1], [], []>} : vector<1x4xf32>, vector<4x8xf32>, vector<1x8xf32> -> vector<1x8xf32>
    %c0_12 = arith.constant 0 : index
    %c0_13 = arith.constant 0 : index
    %16 = vector.load %arg5[%c0_12, %c0_13] : memref<1x8xf32, #tpu.memory_space<vmem>>, vector<1x8xf32>
    %17 = arith.addf %15, %16 : vector<1x8xf32>
    %18 = arith.negf %17 : vector<1x8xf32>
    %19 = math.exp %18 : vector<1x8xf32>
    %cst_14 = arith.constant 1.000000e+00 : f32
    %20 = vector.broadcast %cst_14 : f32 to vector<1x8xf32>
    %21 = arith.addf %20, %19 : vector<1x8xf32>
    %22 = arith.divf %20, %21 : vector<1x8xf32>
    %23 = vector.shape_cast %22 : vector<1x8xf32> to vector<1x8x1xf32>
    %24 = vector.broadcast %23 : vector<1x8x1xf32> to vector<1x8x256xf32>
    %25 = arith.mulf %0, %24 : vector<1x8x256xf32>
    %c0_15 = arith.constant 0 : index
    %c0_16 = arith.constant 0 : index
    %c0_17 = arith.constant 0 : index
    %26 = vector.load %arg6[%c0_15, %c0_16, %c0_17] : memref<1x8x256xf32, #tpu.memory_space<vmem>>, vector<1x8x256xf32>
    tpu.vector_store %arg6[%c0_15, %c0_16, %c0_17], %25 {strides = array<i32>} : memref<1x8x256xf32, #tpu.memory_space<vmem>>, vector<1x8x256xf32>,
    return
  }
  func.func @transform_0(%arg0: i32) -> (i32, i32, i32) {
    %c0_i32 = arith.constant 0 : i32
    %c0_i32_0 = arith.constant 0 : i32
    %c0_i32_1 = arith.constant 0 : i32
    return %arg0, %c0_i32, %c0_i32_0 : i32, i32, i32
  }
  func.func @transform_1(%arg0: i32) -> (i32, i32) {
    %c0_i32 = arith.constant 0 : i32
    %c0_i32_0 = arith.constant 0 : i32
    %c0_i32_1 = arith.constant 0 : i32
    return %c0_i32, %c0_i32_0 : i32, i32
  }
  func.func @transform_2(%arg0: i32) -> (i32, i32) {
    %c0_i32 = arith.constant 0 : i32
    %c0_i32_0 = arith.constant 0 : i32
    %c0_i32_1 = arith.constant 0 : i32
    return %c0_i32, %c0_i32_0 : i32, i32
  }
  func.func @transform_3(%arg0: i32) -> (i32, i32) {
    %c0_i32 = arith.constant 0 : i32
    %c0_i32_0 = arith.constant 0 : i32
    %c0_i32_1 = arith.constant 0 : i32
    return %c0_i32, %c0_i32_0 : i32, i32
  }
  func.func @transform_4(%arg0: i32) -> (i32, i32) {
    %c0_i32 = arith.constant 0 : i32
    %c0_i32_0 = arith.constant 0 : i32
    %c0_i32_1 = arith.constant 0 : i32
    return %c0_i32, %c0_i32_0 : i32, i32
  }
  func.func @transform_5(%arg0: i32) -> (i32, i32, i32) {
    %c0_i32 = arith.constant 0 : i32
    %c0_i32_0 = arith.constant 0 : i32
    %c0_i32_1 = arith.constant 0 : i32
    return %arg0, %c0_i32, %c0_i32_0 : i32, i32, i32
  }
}

</mosaic_0001>

<llo_original>
// kernel: tpu_custom_call.1
$region0: #{tpu_custom_call.1}
  #allocation0 [shape = 'u32[]', space=smem, size = 0x4, offset = 0x4, fixed_abs, tag = 'smem constant byte address 0x4 - core index']
  #allocation1 [shape = 'u32[144,128]{1,0:T(1,128)}', space=vmem, size = 0x12000, scoped, tag = 'internal scratch']
  %s0 = inlined_call_operand.hbm [shape: f32[1,8,256], index: 0, kind: input, shape index: {}]
  %s1 = inlined_call_operand.vmem [shape: f32[8,4], index: 1, kind: input, shape index: {}]
  %s2 = inlined_call_operand.vmem [shape: f32[1,4], index: 2, kind: input, shape index: {}]
  %s3 = inlined_call_operand.vmem [shape: f32[4,8], index: 3, kind: input, shape index: {}]
  %s4 = inlined_call_operand.vmem [shape: f32[1,8], index: 4, kind: input, shape index: {}]
  %s5 = inlined_call_operand.hbm [shape: f32[1,8,256], index: 5, kind: output, shape index: {}]
  %s6 = sld [smem:[#allocation0]]
  $region34: #{tpu_custom_call.1} parent=0
    _
  %s8 = ssub.s32 1, %s6
  %s9 = scalar_select 0, %s8, %s6
  $region1: #{tpu_custom_call.1} parent=0
    #allocation2 [shape = 'u8[8192]{0}', space=vmem, size = 0x2000, scoped, tag = 'input window, operand 0, single buffered']
    #allocation3 [shape = 's32[1]{0}', space=sflag, size = 0x4, scoped, tag = 'scoped memory for tpu_custom_call.1']
    #allocation4 [shape = 's32[1]{0}', space=sflag, size = 0x4, scoped, tag = 'scoped memory for tpu_custom_call.1']
    #allocation5 [shape = 'u8[8192]{0}', space=vmem, size = 0x2000, scoped, tag = 'output window, operand 0, single buffered']
    %10 = vsyncpa [#allocation3], 0
    %11 = vsyncpa [#allocation4], 0
    // Predicated region
    $region2: #{tpu_custom_call.1} parent=1 // pred_check
      _
    $region3: #{tpu_custom_call.1} parent=1 // pred_check_branch
      %13 = sbr.rel (0) target = $region5
    $region4: #{tpu_custom_call.1} parent=1 // pred_region
      %s15 = ssub.s32 256, 256
      %16 = vsyncadd [#allocation3], %s15
      %s18 = sshll.u32 [#allocation2], 4
      %s19 = int_to_ptr.vmem [resolvable:$true] %s18
      %21 = dma.hbm_to_vmem [thread:$0]  %s0, 256, %s19, [#allocation3]
    $region5: #{tpu_custom_call.1} parent=1 // pred_fallthru
      _
    // Predicated region
    $region6: #{tpu_custom_call.1} parent=1 // pred_check
      _
    $region7: #{tpu_custom_call.1} parent=1 // pred_check_branch
      %23 = sbr.rel (0) target = $region9
    $region8: #{tpu_custom_call.1} parent=1 // pred_region
      _
    $region9: #{tpu_custom_call.1} parent=1 // pred_fallthru
      _
    // Predicated region
    $region10: #{tpu_custom_call.1} parent=1 // pred_check
      _
    $region11: #{tpu_custom_call.1} parent=1 // pred_check_branch
      %25 = sbr.rel (0) target = $region13
    $region12: #{tpu_custom_call.1} parent=1 // pred_region
      _
    $region13: #{tpu_custom_call.1} parent=1 // pred_fallthru
      _
    // Predicated region
    $region14: #{tpu_custom_call.1} parent=1 // pred_check
      _
    $region15: #{tpu_custom_call.1} parent=1 // pred_check_branch
      %27 = sbr.rel (0) target = $region17
    $region16: #{tpu_custom_call.1} parent=1 // pred_region
      _
    $region17: #{tpu_custom_call.1} parent=1 // pred_fallthru
      _
    // Predicated region
    $region18: #{tpu_custom_call.1} parent=1 // pred_check
      _
    $region19: #{tpu_custom_call.1} parent=1 // pred_check_branch
      %29 = sbr.rel (0) target = $region21
    $region20: #{tpu_custom_call.1} parent=1 // pred_region
      _
    $region21: #{tpu_custom_call.1} parent=1 // pred_fallthru
      _
    // Predicated region
    $region22: #{tpu_custom_call.1} parent=1 // pred_check
      _
    $region23: #{tpu_custom_call.1} parent=1 // pred_check_branch
      %31 = sbr.rel (0) target = $region25
    $region24: #{tpu_custom_call.1} parent=1 // pred_region
      %32 = dma.done [#allocation3], 256
    $region25: #{tpu_custom_call.1} parent=1 // pred_fallthru
      _
    %v33 = vld [vmem:[#allocation2] sm:$0xff]
    %v34 = vld [vmem:[#allocation2 + $0x8] sm:$0xff]
    %v35 = vadd.f32 %v33, %v34
    %36 = vadd.xlane.f32.xlu0 %v35
    %v37 = vpop.xlane.xlu0 %36
    %v38 = vmul.f32 %v37, 0.00390625
    %v39 = vld [vmem:[%s1] sm:$0xff]
    %v40 = vld [vmem:[%s2] sm:$0x1]
    %v42 = vlaneseq
    %v43 = vand.u32 %v42, 127
    %v44 = vlaneseq
    %v45 = vshrl.u32 %v44, 7
    %v46 = vsub.s32 %v43, %v45
    %v47 = vrot.slane %v38, %v46
    %vm48 = vcmask 64512
    %v49 = vsel %vm48, %v47, 0
    %51 = vmatprep.subr.mxu0 0.0
    %52 = vmatpush1.msra.mxu0 %v39
    %53 = vmatprep.subr.mxu0 0.0
    %54 = vmatpush1.msra.mxu0 0.0
    %55 = vmatprep.subr.mxu0 0.0
    %56 = vmatpush1.msra.mxu0 0.0
    %57 = vmatprep.subr.mxu0 0.0
    %58 = vmatpush1.msra.mxu0 0.0
    %59 = vmatprep.subr.mxu0 0.0
    %60 = vmatpush1.msra.mxu0 0.0
    %61 = vmatprep.subr.mxu0 0.0
    %62 = vmatpush1.msra.mxu0 0.0
    %63 = vmatprep.subr.mxu0 0.0
    %64 = vmatpush1.msra.mxu0 0.0
    %65 = vmatprep.subr.mxu0 0.0
    %66 = vmatpush1.msra.mxu0 0.0
    %67 = vmatprep.subr.mxu0 0.0
    %68 = vmatpush1.msra.mxu0 0.0
    %69 = vmatprep.subr.mxu0 0.0
    %70 = vmatpush1.msra.mxu0 0.0
    %71 = vmatprep.subr.mxu0 0.0
    %72 = vmatpush1.msra.mxu0 0.0
    %73 = vmatprep.subr.mxu0 0.0
    %74 = vmatpush1.msra.mxu0 0.0
    %75 = vmatprep.subr.mxu0 0.0
    %76 = vmatpush1.msra.mxu0 0.0
    %77 = vmatprep.subr.mxu0 0.0
    %78 = vmatpush1.msra.mxu0 0.0
    %79 = vmatprep.subr.mxu0 0.0
    %80 = vmatpush1.msra.mxu0 0.0
    %81 = vmatprep.subr.mxu0 0.0
    %82 = vmatpush1.msra.mxu0 0.0
    %83 = vmatprep.subr.mxu0 0.0
    %84 = vmatpush1.msra.mxu0 0.0
    %85 = vmatprep.subr.mxu0 0.0
    %86 = vmatpush1.msra.mxu0 0.0
    %87 = vmatprep.subr.mxu0 0.0
    %88 = vmatpush1.msra.mxu0 0.0
    %89 = vmatprep.subr.mxu0 0.0
    %90 = vmatpush1.msra.mxu0 0.0
    %91 = vmatprep.subr.mxu0 0.0
    %92 = vmatpush1.msra.mxu0 0.0
    %93 = vmatprep.subr.mxu0 0.0
    %94 = vmatpush1.msra.mxu0 0.0
    %95 = vmatprep.subr.mxu0 0.0
    %96 = vmatpush1.msra.mxu0 0.0
    %97 = vmatprep.subr.mxu0 0.0
    %98 = vmatpush1.msra.mxu0 0.0
    %99 = vmatprep.subr.mxu0 0.0
    %100 = vmatpush1.msra.mxu0 0.0
    %101 = vmatprep.subr.mxu0 0.0
    %102 = vmatpush1.msra.mxu0 0.0
    %103 = vmatprep.subr.mxu0 0.0
    %104 = vmatpush1.msra.mxu0 0.0
    %105 = vmatprep.subr.mxu0 0.0
    %106 = vmatpush1.msra.mxu0 0.0
    %107 = vmatprep.subr.mxu0 0.0
    %108 = vmatpush1.msra.mxu0 0.0
    %109 = vmatprep.subr.mxu0 0.0
    %110 = vmatpush1.msra.mxu0 0.0
    %111 = vmatprep.subr.mxu0 0.0
    %112 = vmatpush1.msra.mxu0 0.0
    %113 = vmatprep.subr.mxu0 0.0
    %114 = vmatpush1.msra.mxu0 0.0
    %115 = vmatprep.mubr.f32.mxu0 0.0
    %116 = vmatmul.mubr.f32.gmra.mrb[0].mxu0 %v49
    %v117 = vpop.f32.mrb[0].mxu0
    %v118 = vadd.f32 %v40, %v117
    %v119 = vpop.f32.mrb[0].mxu0
    %120 = vdwg.mxu0
    %v121 = vxor.u32 %v118, 2147483648
    %v122 = vmul.f32 %v121, 1.442695
    %v123 = vpow.pop %v122
    %v124 = vadd.f32 %v123, 1.0
    %v125 = vrcp.pop %v124
    %v126 = vmul.f32 1.0, %v125
    %v127 = vmul.f32 %v118, %v126
    %v128 = vld [vmem:[%s3] sm:$0xf]
    %v129 = vld [vmem:[%s4] sm:$0x1]
    %vm130 = vcmask 31744
    %v132 = vsel %vm130, %v127, 0
    %vm134 = vcmask 1043456
    %v136 = vsel %vm134, %v128, 0
    %138 = vmatprep.subr.mxu0 0.0
    %139 = vmatpush1.msra.mxu0 %v136
    %140 = vmatprep.subr.mxu0 0.0
    %141 = vmatpush1.msra.mxu0 0.0
    %142 = vmatprep.subr.mxu0 0.0
    %143 = vmatpush1.msra.mxu0 0.0
    %144 = vmatprep.subr.mxu0 0.0
    %145 = vmatpush1.msra.mxu0 0.0
    %146 = vmatprep.subr.mxu0 0.0
    %147 = vmatpush1.msra.mxu0 0.0
    %148 = vmatprep.subr.mxu0 0.0
    %149 = vmatpush1.msra.mxu0 0.0
    %150 = vmatprep.subr.mxu0 0.0
    %151 = vmatpush1.msra.mxu0 0.0
    %152 = vmatprep.subr.mxu0 0.0
    %153 = vmatpush1.msra.mxu0 0.0
    %154 = vmatprep.subr.mxu0 0.0
    %155 = vmatpush1.msra.mxu0 0.0
    %156 = vmatprep.subr.mxu0 0.0
    %157 = vmatpush1.msra.mxu0 0.0
    %158 = vmatprep.subr.mxu0 0.0
    %159 = vmatpush1.msra.mxu0 0.0
    %160 = vmatprep.subr.mxu0 0.0
    %161 = vmatpush1.msra.mxu0 0.0
    %162 = vmatprep.subr.mxu0 0.0
    %163 = vmatpush1.msra.mxu0 0.0
    %164 = vmatprep.subr.mxu0 0.0
    %165 = vmatpush1.msra.mxu0 0.0
    %166 = vmatprep.subr.mxu0 0.0
    %167 = vmatpush1.msra.mxu0 0.0
    %168 = vmatprep.subr.mxu0 0.0
    %169 = vmatpush1.msra.mxu0 0.0
    %170 = vmatprep.subr.mxu0 0.0
    %171 = vmatpush1.msra.mxu0 0.0
    %172 = vmatprep.subr.mxu0 0.0
    %173 = vmatpush1.msra.mxu0 0.0
    %174 = vmatprep.subr.mxu0 0.0
    %175 = vmatpush1.msra.mxu0 0.0
    %176 = vmatprep.subr.mxu0 0.0
    %177 = vmatpush1.msra.mxu0 0.0
    %178 = vmatprep.subr.mxu0 0.0
    %179 = vmatpush1.msra.mxu0 0.0
    %180 = vmatprep.subr.mxu0 0.0
    %181 = vmatpush1.msra.mxu0 0.0
    %182 = vmatprep.subr.mxu0 0.0
    %183 = vmatpush1.msra.mxu0 0.0
    %184 = vmatprep.subr.mxu0 0.0
    %185 = vmatpush1.msra.mxu0 0.0
    %186 = vmatprep.subr.mxu0 0.0
    %187 = vmatpush1.msra.mxu0 0.0
    %188 = vmatprep.subr.mxu0 0.0
    %189 = vmatpush1.msra.mxu0 0.0
    %190 = vmatprep.subr.mxu0 0.0
    %191 = vmatpush1.msra.mxu0 0.0
    %192 = vmatprep.subr.mxu0 0.0
    %193 = vmatpush1.msra.mxu0 0.0
    %194 = vmatprep.subr.mxu0 0.0
    %195 = vmatpush1.msra.mxu0 0.0
    %196 = vmatprep.subr.mxu0 0.0
    %197 = vmatpush1.msra.mxu0 0.0
    %198 = vmatprep.subr.mxu0 0.0
    %199 = vmatpush1.msra.mxu0 0.0
    %200 = vmatprep.subr.mxu0 0.0
    %201 = vmatpush1.msra.mxu0 0.0
    %202 = vmatprep.mubr.f32.mxu0 0.0
    %203 = vmatmul.mubr.f32.gmra.mrb[0].mxu0 %v132
    %v204 = vpop.f32.mrb[0].mxu0
    %v205 = vadd.f32 %v129, %v204
    %v206 = vpop.f32.mrb[0].mxu0
    %207 = vdwg.mxu0
    %v208 = vxor.u32 %v205, 2147483648
    %v209 = vmul.f32 %v208, 1.442695
    %v210 = vpow.pop %v209
    %v211 = vadd.f32 %v210, 1.0
    %v212 = vrcp.pop %v211
    %v213 = vmul.f32 1.0, %v212
    %v214 = vlaneseq
    %v215 = vshrl.u32 %v214, 7
    %v216 = vsub.s32 0, %v215
    %v217 = vrot.slane %v213, %v216
    %219 = vbcast.lane.b32.xlu0 %v217, 256
    %v220 = vpop.permute.xlu0 %219
    %v221 = vmul.f32 %v33, %v220
    %v222 = vmul.f32 %v34, %v220
    %223 = vst [vmem:[#allocation5] sm:$0xff] %v221
    %224 = vst [vmem:[#allocation5 + $0x8] sm:$0xff] %v222
    // Predicated region
    $region26: #{tpu_custom_call.1} parent=1 // pred_check
      _
    $region27: #{tpu_custom_call.1} parent=1 // pred_check_branch
      %226 = sbr.rel (0) target = $region29
    $region28: #{tpu_custom_call.1} parent=1 // pred_region
      %s228 = ssub.s32 256, 256
      %229 = vsyncadd [#allocation4], %s228
      %s231 = sshll.u32 [#allocation5], 4
      %s232 = int_to_ptr.vmem [resolvable:$true] %s231
      %234 = dma.vmem_to_hbm [thread:$0]  %s232, 256, %s5, [#allocation4]
    $region29: #{tpu_custom_call.1} parent=1 // pred_fallthru
      _
    // Predicated region
    $region30: #{tpu_custom_call.1} parent=1 // pred_check
      _
    $region31: #{tpu_custom_call.1} parent=1 // pred_check_branch
      %236 = sbr.rel (0) target = $region33
    $region32: #{tpu_custom_call.1} parent=1 // pred_region
      %237 = dma.done [#allocation4], 256
    $region33: #{tpu_custom_call.1} parent=1 // pred_fallthru
      _
    %238 = vsyncpa [#allocation3], 1
    %239 = vsyncpa [#allocation4], 1

</llo_original>
